<compile_context>
chip_gen: v7x
topology: tpu7x:2x2x1
jax: 0.10.0
libtpu: 0.0.40
codegen_flags: <defaults>
</compile_context>

<pallas_src>
import functools

import jax
import jax.numpy as jnp
from jax import lax
from jax.experimental import pallas as pl
from jax.experimental.pallas import tpu as pltpu

LANE = 128  # pad feature/class widths to this for lane-dense MXU/stores


# ------------------------------ fused kernel --------------------------------

def _appnp_fused_kernel(*refs, n_layers, k, alpha):
    """refs = (x, w0t, b0, w1t, b1, ..., adj, out).  All full-array VMEM blocks."""
    x_ref = refs[0]
    wb_refs = refs[1:1 + 2 * n_layers]
    adj_ref = refs[1 + 2 * n_layers]
    o_ref = refs[2 + 2 * n_layers]

    # --- MLP feature transform (ReLU on all but the last layer) ---
    h = x_ref[...]
    for i in range(n_layers):
        w = wb_refs[2 * i][...]          # (Din_pad, Dout_pad), already transposed
        b = wb_refs[2 * i + 1][...]      # (1, Dout_pad) broadcasts over rows
        h = jnp.dot(h, w, preferred_element_type=jnp.float32) + b
        if i < n_layers - 1:
            h = jnp.maximum(h, 0.0)

    # --- APPNP propagation: h <- (1-alpha) * Ahat @ h + alpha * h0, k times ---
    h0 = h
    adj = adj_ref[...]

    def body(_, hc):
        ah = jnp.dot(adj, hc, preferred_element_type=jnp.float32)
        return (1.0 - alpha) * ah + alpha * h0

    h = lax.fori_loop(0, k, body, h0, unroll=True)   # h stays in vregs

    o_ref[...] = h.astype(o_ref.dtype)


# ------------------------------- wrapper -------------------------------------

def prepare_params(params, in_feats, lane=LANE):
    """Pre-transpose PyTorch-layout (W:(out,in), b:(out,)) once and zero-pad
    output widths up to a multiple of `lane` for lane-dense MXU tiles/stores."""
    padded = []
    prev_pad = in_feats                      # input x is not padded
    for (w, b) in params:
        out_f, in_f = w.shape
        out_pad = ((out_f + lane - 1) // lane) * lane
        wt = jnp.zeros((prev_pad, out_pad), jnp.float32)
        wt = wt.at[:in_f, :out_f].set(jnp.transpose(w).astype(jnp.float32))
        bp = jnp.zeros((1, out_pad), jnp.float32).at[0, :out_f].set(
            b.astype(jnp.float32))
        padded.append((wt, bp))
        prev_pad = out_pad
    return padded


def appnp_forward(features, adj, padded_params, n_classes, *, k, alpha):
    """features: (N, Din) f32, adj: (N, N) f32 normalized adjacency.
    padded_params: output of prepare_params. Returns (N, n_classes)."""
    N = features.shape[0]
    n_layers = len(padded_params)
    c_pad = padded_params[-1][0].shape[1]

    args = [features]
    in_specs = [pl.BlockSpec(features.shape, lambda: (0, 0))]
    for (wt, bp) in padded_params:
        args += [wt, bp]
        in_specs += [pl.BlockSpec(wt.shape, lambda: (0, 0)),
                     pl.BlockSpec(bp.shape, lambda: (0, 0))]
    args.append(adj)
    in_specs.append(pl.BlockSpec(adj.shape, lambda: (0, 0)))

    out = pl.pallas_call(
        functools.partial(_appnp_fused_kernel,
                          n_layers=n_layers, k=k, alpha=float(alpha)),
        out_shape=jax.ShapeDtypeStruct((N, c_pad), jnp.float32),
        in_specs=in_specs,
        out_specs=pl.BlockSpec((N, c_pad), lambda: (0, 0)),
    )(*args)
    return out[:, :n_classes]                # drop lane padding (glue)


# ------------------------- deterministic setup glue --------------------------

def init_linear(key, in_f, out_f):
    # Deterministic init mimicking nn.Linear.reset_parameters (uniform +-1/sqrt(in)).
    kw, kb = jax.random.split(key)
    bound = 1.0 / jnp.sqrt(jnp.float32(in_f))
    w = jax.random.uniform(kw, (out_f, in_f), jnp.float32, -bound, bound)
    b = jax.random.uniform(kb, (out_f,), jnp.float32, -bound, bound)
    return w, b


def build_norm_adj(edge_index, n_nodes):
    """Dense symmetric-normalized adjacency with self loops: D^-1/2 (A+I) D^-1/2.
    (Graph-construction glue; adjust to match the exact APPNPConv normalization
    of the reference framework if it differs, e.g. DGL does not add self-loops.)"""
    src, dst = edge_index
    a = jnp.zeros((n_nodes, n_nodes), jnp.float32)
    a = a.at[src, dst].set(1.0)
    a = jnp.maximum(a, a.T)                         # symmetrize
    a = a + jnp.eye(n_nodes, dtype=jnp.float32)     # self loops
    deg = a.sum(axis=1)
    dinv = jax.lax.rsqrt(deg)
    return dinv[:, None] * a * dinv[None, :]


if __name__ == "__main__":
    key = jax.random.PRNGKey(0)

    # Small shapes consistent with the module
    N_NODES = 64
    IN_FEATS = 32
    HIDDENS = [32]
    N_CLASSES = 16
    K = 8
    ALPHA = 0.1
    N_EDGES = 256

    k_feat, k_edge, k_l0, k_l1 = jax.random.split(key, 4)

    features = jax.random.normal(k_feat, (N_NODES, IN_FEATS), jnp.float32)
    src = jax.random.randint(k_edge, (N_EDGES,), 0, N_NODES)
    dst = jax.random.randint(jax.random.fold_in(k_edge, 1), (N_EDGES,), 0, N_NODES)
    edge_index = (src, dst)

    adj = build_norm_adj(edge_index, N_NODES)

    # layers: Linear(in_feats -> hiddens[0]), ..., Linear(hiddens[-1] -> n_classes)
    params = [
        init_linear(k_l0, IN_FEATS, HIDDENS[0]),
        init_linear(k_l1, HIDDENS[-1], N_CLASSES),
    ]
    padded_params = prepare_params(params, IN_FEATS)   # transpose + pad once

    out = appnp_forward(features, adj, padded_params, N_CLASSES, k=K, alpha=ALPHA)
    out = jax.block_until_ready(out)

    # Cross-check against a plain-JAX reference of the same math.
    h_ref = jnp.maximum(features @ params[0][0].T + params[0][1], 0.0)
    h_ref = h_ref @ params[1][0].T + params[1][1]
    h0 = h_ref
    for _ in range(K):
        h_ref = (1.0 - ALPHA) * (adj @ h_ref) + ALPHA * h0

    assert out.shape == (N_NODES, N_CLASSES)
    assert bool(jnp.all(jnp.isfinite(out)))
    assert bool(jnp.allclose(out, h_ref, atol=1e-4, rtol=1e-4))
    print("KERNEL_OK")
</pallas_src>

<mosaic_0001>
module attributes {stable_mosaic.version = 11 : i64} {
  func.func @_appnp_fused_kernel(%arg0: memref<64x32xf32, #tpu.memory_space<vmem>>, %arg1: memref<32x128xf32, #tpu.memory_space<vmem>>, %arg2: memref<1x128xf32, #tpu.memory_space<vmem>>, %arg3: memref<128x128xf32, #tpu.memory_space<vmem>>, %arg4: memref<1x128xf32, #tpu.memory_space<vmem>>, %arg5: memref<64x64xf32, #tpu.memory_space<vmem>>, %arg6: memref<64x128xf32, #tpu.memory_space<vmem>>) attributes {dimension_semantics = [], scalar_prefetch = 0 : i64, scratch_operands = 0 : i64, tpu.core_type = #tpu.core_type<tc>} {
    %c0 = arith.constant 0 : index
    %c0_0 = arith.constant 0 : index
    %0 = vector.load %arg0[%c0, %c0_0] : memref<64x32xf32, #tpu.memory_space<vmem>>, vector<64x32xf32>
    %c0_1 = arith.constant 0 : index
    %c0_2 = arith.constant 0 : index
    %1 = vector.load %arg1[%c0_1, %c0_2] : memref<32x128xf32, #tpu.memory_space<vmem>>, vector<32x128xf32>
    %c0_3 = arith.constant 0 : index
    %c0_4 = arith.constant 0 : index
    %2 = vector.load %arg2[%c0_3, %c0_4] : memref<1x128xf32, #tpu.memory_space<vmem>>, vector<1x128xf32>
    %cst = arith.constant dense<0.000000e+00> : vector<64x128xf32>
    %3 = tpu.matmul %0, %1, %cst {dimension_numbers = #tpu.dot_dimension_numbers<[1], [0], [0], [1], [0, 0, 1, 1], [], []>} : vector<64x32xf32>, vector<32x128xf32>, vector<64x128xf32> -> vector<64x128xf32>
    %4 = vector.broadcast %2 : vector<1x128xf32> to vector<64x128xf32>
    %5 = arith.addf %3, %4 : vector<64x128xf32>
    %cst_5 = arith.constant 0.000000e+00 : f32
    %6 = vector.broadcast %cst_5 : f32 to vector<64x128xf32>
    %7 = arith.maximumf %5, %6 : vector<64x128xf32>
    %c0_6 = arith.constant 0 : index
    %c0_7 = arith.constant 0 : index
    %8 = vector.load %arg3[%c0_6, %c0_7] : memref<128x128xf32, #tpu.memory_space<vmem>>, vector<128x128xf32>
    %c0_8 = arith.constant 0 : index
    %c0_9 = arith.constant 0 : index
    %9 = vector.load %arg4[%c0_8, %c0_9] : memref<1x128xf32, #tpu.memory_space<vmem>>, vector<1x128xf32>
    %cst_10 = arith.constant dense<0.000000e+00> : vector<64x128xf32>
    %10 = tpu.matmul %7, %8, %cst_10 {dimension_numbers = #tpu.dot_dimension_numbers<[1], [0], [0], [1], [0, 0, 1, 1], [], []>} : vector<64x128xf32>, vector<128x128xf32>, vector<64x128xf32> -> vector<64x128xf32>
    %11 = vector.broadcast %9 : vector<1x128xf32> to vector<64x128xf32>
    %12 = arith.addf %10, %11 : vector<64x128xf32>
    %c0_11 = arith.constant 0 : index
    %c0_12 = arith.constant 0 : index
    %13 = vector.load %arg5[%c0_11, %c0_12] : memref<64x64xf32, #tpu.memory_space<vmem>>, vector<64x64xf32>
    %c0_i32 = arith.constant 0 : i32
    %cst_13 = arith.constant dense<0.000000e+00> : vector<64x128xf32>
    %14 = tpu.matmul %13, %12, %cst_13 {dimension_numbers = #tpu.dot_dimension_numbers<[1], [0], [0], [1], [0, 0, 1, 1], [], []>} : vector<64x64xf32>, vector<64x128xf32>, vector<64x128xf32> -> vector<64x128xf32>
    %cst_14 = arith.constant 0.899999976 : f32
    %15 = vector.broadcast %cst_14 : f32 to vector<64x128xf32>
    %16 = arith.mulf %15, %14 : vector<64x128xf32>
    %cst_15 = arith.constant 1.000000e-01 : f32
    %17 = vector.broadcast %cst_15 : f32 to vector<64x128xf32>
    %18 = arith.mulf %17, %12 : vector<64x128xf32>
    %19 = arith.addf %16, %18 : vector<64x128xf32>
    %c1_i32 = arith.constant 1 : i32
    %cst_16 = arith.constant dense<0.000000e+00> : vector<64x128xf32>
    %20 = tpu.matmul %13, %19, %cst_16 {dimension_numbers = #tpu.dot_dimension_numbers<[1], [0], [0], [1], [0, 0, 1, 1], [], []>} : vector<64x64xf32>, vector<64x128xf32>, vector<64x128xf32> -> vector<64x128xf32>
    %cst_17 = arith.constant 0.899999976 : f32
    %21 = vector.broadcast %cst_17 : f32 to vector<64x128xf32>
    %22 = arith.mulf %21, %20 : vector<64x128xf32>
    %cst_18 = arith.constant 1.000000e-01 : f32
    %23 = vector.broadcast %cst_18 : f32 to vector<64x128xf32>
    %24 = arith.mulf %23, %12 : vector<64x128xf32>
    %25 = arith.addf %22, %24 : vector<64x128xf32>
    %c2_i32 = arith.constant 2 : i32
    %cst_19 = arith.constant dense<0.000000e+00> : vector<64x128xf32>
    %26 = tpu.matmul %13, %25, %cst_19 {dimension_numbers = #tpu.dot_dimension_numbers<[1], [0], [0], [1], [0, 0, 1, 1], [], []>} : vector<64x64xf32>, vector<64x128xf32>, vector<64x128xf32> -> vector<64x128xf32>
    %cst_20 = arith.constant 0.899999976 : f32
    %27 = vector.broadcast %cst_20 : f32 to vector<64x128xf32>
    %28 = arith.mulf %27, %26 : vector<64x128xf32>
    %cst_21 = arith.constant 1.000000e-01 : f32
    %29 = vector.broadcast %cst_21 : f32 to vector<64x128xf32>
    %30 = arith.mulf %29, %12 : vector<64x128xf32>
    %31 = arith.addf %28, %30 : vector<64x128xf32>
    %c3_i32 = arith.constant 3 : i32
    %cst_22 = arith.constant dense<0.000000e+00> : vector<64x128xf32>
    %32 = tpu.matmul %13, %31, %cst_22 {dimension_numbers = #tpu.dot_dimension_numbers<[1], [0], [0], [1], [0, 0, 1, 1], [], []>} : vector<64x64xf32>, vector<64x128xf32>, vector<64x128xf32> -> vector<64x128xf32>
    %cst_23 = arith.constant 0.899999976 : f32
    %33 = vector.broadcast %cst_23 : f32 to vector<64x128xf32>
    %34 = arith.mulf %33, %32 : vector<64x128xf32>
    %cst_24 = arith.constant 1.000000e-01 : f32
    %35 = vector.broadcast %cst_24 : f32 to vector<64x128xf32>
    %36 = arith.mulf %35, %12 : vector<64x128xf32>
    %37 = arith.addf %34, %36 : vector<64x128xf32>
    %c4_i32 = arith.constant 4 : i32
    %cst_25 = arith.constant dense<0.000000e+00> : vector<64x128xf32>
    %38 = tpu.matmul %13, %37, %cst_25 {dimension_numbers = #tpu.dot_dimension_numbers<[1], [0], [0], [1], [0, 0, 1, 1], [], []>} : vector<64x64xf32>, vector<64x128xf32>, vector<64x128xf32> -> vector<64x128xf32>
    %cst_26 = arith.constant 0.899999976 : f32
    %39 = vector.broadcast %cst_26 : f32 to vector<64x128xf32>
    %40 = arith.mulf %39, %38 : vector<64x128xf32>
    %cst_27 = arith.constant 1.000000e-01 : f32
    %41 = vector.broadcast %cst_27 : f32 to vector<64x128xf32>
    %42 = arith.mulf %41, %12 : vector<64x128xf32>
    %43 = arith.addf %40, %42 : vector<64x128xf32>
    %c5_i32 = arith.constant 5 : i32
    %cst_28 = arith.constant dense<0.000000e+00> : vector<64x128xf32>
    %44 = tpu.matmul %13, %43, %cst_28 {dimension_numbers = #tpu.dot_dimension_numbers<[1], [0], [0], [1], [0, 0, 1, 1], [], []>} : vector<64x64xf32>, vector<64x128xf32>, vector<64x128xf32> -> vector<64x128xf32>
    %cst_29 = arith.constant 0.899999976 : f32
    %45 = vector.broadcast %cst_29 : f32 to vector<64x128xf32>
    %46 = arith.mulf %45, %44 : vector<64x128xf32>
    %cst_30 = arith.constant 1.000000e-01 : f32
    %47 = vector.broadcast %cst_30 : f32 to vector<64x128xf32>
    %48 = arith.mulf %47, %12 : vector<64x128xf32>
    %49 = arith.addf %46, %48 : vector<64x128xf32>
    %c6_i32 = arith.constant 6 : i32
    %cst_31 = arith.constant dense<0.000000e+00> : vector<64x128xf32>
    %50 = tpu.matmul %13, %49, %cst_31 {dimension_numbers = #tpu.dot_dimension_numbers<[1], [0], [0], [1], [0, 0, 1, 1], [], []>} : vector<64x64xf32>, vector<64x128xf32>, vector<64x128xf32> -> vector<64x128xf32>
    %cst_32 = arith.constant 0.899999976 : f32
    %51 = vector.broadcast %cst_32 : f32 to vector<64x128xf32>
    %52 = arith.mulf %51, %50 : vector<64x128xf32>
    %cst_33 = arith.constant 1.000000e-01 : f32
    %53 = vector.broadcast %cst_33 : f32 to vector<64x128xf32>
    %54 = arith.mulf %53, %12 : vector<64x128xf32>
    %55 = arith.addf %52, %54 : vector<64x128xf32>
    %c7_i32 = arith.constant 7 : i32
    %cst_34 = arith.constant dense<0.000000e+00> : vector<64x128xf32>
    %56 = tpu.matmul %13, %55, %cst_34 {dimension_numbers = #tpu.dot_dimension_numbers<[1], [0], [0], [1], [0, 0, 1, 1], [], []>} : vector<64x64xf32>, vector<64x128xf32>, vector<64x128xf32> -> vector<64x128xf32>
    %cst_35 = arith.constant 0.899999976 : f32
    %57 = vector.broadcast %cst_35 : f32 to vector<64x128xf32>
    %58 = arith.mulf %57, %56 : vector<64x128xf32>
    %cst_36 = arith.constant 1.000000e-01 : f32
    %59 = vector.broadcast %cst_36 : f32 to vector<64x128xf32>
    %60 = arith.mulf %59, %12 : vector<64x128xf32>
    %61 = arith.addf %58, %60 : vector<64x128xf32>
    %c0_37 = arith.constant 0 : index
    %c0_38 = arith.constant 0 : index
    %62 = vector.load %arg6[%c0_37, %c0_38] : memref<64x128xf32, #tpu.memory_space<vmem>>, vector<64x128xf32>
    tpu.vector_store %arg6[%c0_37, %c0_38], %61 {strides = array<i32>} : memref<64x128xf32, #tpu.memory_space<vmem>>, vector<64x128xf32>,
    return
  }
}

</mosaic_0001>

<llo_original>
// kernel: tpu_custom_call.1
$region0: #{tpu_custom_call.1}
  #allocation0 [shape = 'u32[]', space=smem, size = 0x4, offset = 0x4, fixed_abs, tag = 'smem constant byte address 0x4 - core index']
  #allocation1 [shape = 'u32[144,128]{1,0:T(1,128)}', space=vmem, size = 0x12000, scoped, tag = 'internal scratch']
  %s0 = inlined_call_operand.vmem [shape: f32[64,32], index: 0, kind: input, shape index: {}]
  %s1 = inlined_call_operand.vmem [shape: f32[32,128], index: 1, kind: input, shape index: {}]
  %s2 = inlined_call_operand.vmem [shape: f32[1,128], index: 2, kind: input, shape index: {}]
  %s3 = inlined_call_operand.hbm [shape: f32[128,128], index: 3, kind: input, shape index: {}]
  %s4 = inlined_call_operand.vmem [shape: f32[1,128], index: 4, kind: input, shape index: {}]
  %s5 = inlined_call_operand.vmem [shape: f32[64,64], index: 5, kind: input, shape index: {}]
  %s6 = inlined_call_operand.hbm [shape: f32[64,128], index: 6, kind: output, shape index: {}]
  %s7 = sld [smem:[#allocation0]]
  $region38: #{tpu_custom_call.1} parent=0
    _
  %s9 = ssub.s32 1, %s7
  %s10 = scalar_select 0, %s9, %s7
  $region1: #{tpu_custom_call.1} parent=0
    #allocation2 [shape = 'u8[65536]{0}', space=vmem, size = 0x10000, scoped, tag = 'input window, operand 3, single buffered']
    #allocation3 [shape = 's32[1]{0}', space=sflag, size = 0x4, scoped, tag = 'scoped memory for tpu_custom_call.1']
    #allocation4 [shape = 's32[1]{0}', space=sflag, size = 0x4, scoped, tag = 'scoped memory for tpu_custom_call.1']
    #allocation5 [shape = 'u8[32768]{0}', space=vmem, size = 0x8000, scoped, tag = 'output window, operand 0, single buffered']
    %11 = vsyncpa [#allocation3], 0
    %12 = vsyncpa [#allocation4], 0
    // Predicated region
    $region2: #{tpu_custom_call.1} parent=1 // pred_check
      _
    $region3: #{tpu_custom_call.1} parent=1 // pred_check_branch
      %14 = sbr.rel (0) target = $region5
    $region4: #{tpu_custom_call.1} parent=1 // pred_region
      _
    $region5: #{tpu_custom_call.1} parent=1 // pred_fallthru
      _
    // Predicated region
    $region6: #{tpu_custom_call.1} parent=1 // pred_check
      _
    $region7: #{tpu_custom_call.1} parent=1 // pred_check_branch
      %16 = sbr.rel (0) target = $region9
    $region8: #{tpu_custom_call.1} parent=1 // pred_region
      _
    $region9: #{tpu_custom_call.1} parent=1 // pred_fallthru
      _
    // Predicated region
    $region10: #{tpu_custom_call.1} parent=1 // pred_check
      _
    $region11: #{tpu_custom_call.1} parent=1 // pred_check_branch
      %18 = sbr.rel (0) target = $region13
    $region12: #{tpu_custom_call.1} parent=1 // pred_region
      _
    $region13: #{tpu_custom_call.1} parent=1 // pred_fallthru
      _
    // Predicated region
    $region14: #{tpu_custom_call.1} parent=1 // pred_check
      _
    $region15: #{tpu_custom_call.1} parent=1 // pred_check_branch
      %20 = sbr.rel (0) target = $region17
    $region16: #{tpu_custom_call.1} parent=1 // pred_region
      %s22 = ssub.s32 2048, 2048
      %23 = vsyncadd [#allocation3], %s22
      %s24 = sshll.u32 [#allocation2], 4
      %s25 = int_to_ptr.vmem [resolvable:$true] %s24
      %30 = dma.hbm_to_vmem [thread:$0]  %s3, 2048, %s25, [#allocation3], 128, 128, 8
    $region17: #{tpu_custom_call.1} parent=1 // pred_fallthru
      _
    // Predicated region
    $region18: #{tpu_custom_call.1} parent=1 // pred_check
      _
    $region19: #{tpu_custom_call.1} parent=1 // pred_check_branch
      %32 = sbr.rel (0) target = $region21
    $region20: #{tpu_custom_call.1} parent=1 // pred_region
      _
    $region21: #{tpu_custom_call.1} parent=1 // pred_fallthru
      _
    // Predicated region
    $region22: #{tpu_custom_call.1} parent=1 // pred_check
      _
    $region23: #{tpu_custom_call.1} parent=1 // pred_check_branch
      %34 = sbr.rel (0) target = $region25
    $region24: #{tpu_custom_call.1} parent=1 // pred_region
      _
    $region25: #{tpu_custom_call.1} parent=1 // pred_fallthru
      _
    // Predicated region
    $region26: #{tpu_custom_call.1} parent=1 // pred_check
      _
    $region27: #{tpu_custom_call.1} parent=1 // pred_check_branch
      %36 = sbr.rel (0) target = $region29
    $region28: #{tpu_custom_call.1} parent=1 // pred_region
      %37 = dma.done [#allocation3], 2048
    $region29: #{tpu_custom_call.1} parent=1 // pred_fallthru
      _
    %v38 = vld [vmem:[%s0] sm:$0xff]
    %v39 = vld [vmem:[%s0 + $0x8] sm:$0xff]
    %v40 = vld [vmem:[%s0 + $0x10] sm:$0xff]
    %v41 = vld [vmem:[%s0 + $0x18] sm:$0xff]
    %v42 = vld [vmem:[%s0 + $0x20] sm:$0xff]
    %v43 = vld [vmem:[%s0 + $0x28] sm:$0xff]
    %v44 = vld [vmem:[%s0 + $0x30] sm:$0xff]
    %v45 = vld [vmem:[%s0 + $0x38] sm:$0xff]
    %v46 = vld [vmem:[%s1] sm:$0xff]
    %v47 = vld [vmem:[%s1 + $0x8] sm:$0xff]
    %v48 = vld [vmem:[%s1 + $0x10] sm:$0xff]
    %v49 = vld [vmem:[%s1 + $0x18] sm:$0xff]
    %v50 = vld [vmem:[%s2] sm:$0x1]
    %v52 = vlaneseq
    %v53 = vshrl.u32 %v52, 7
    %v54 = vsub.s32 0, %v53
    %v55 = vrot.slane %v50, %v54
    %vm57 = vcmask 261120
    %v59 = vsel %vm57, %v38, 0
    %v62 = vsel %vm57, %v39, 0
    %v65 = vsel %vm57, %v40, 0
    %v68 = vsel %vm57, %v41, 0
    %v71 = vsel %vm57, %v42, 0
    %v74 = vsel %vm57, %v43, 0
    %v77 = vsel %vm57, %v44, 0
    %v80 = vsel %vm57, %v45, 0
    %82 = vmatprep.subr.mxu0 0.0
    %83 = vmatpush1.msra.mxu0 %v46
    %84 = vmatprep.subr.mxu0 0.0
    %85 = vmatpush1.msra.mxu0 %v47
    %86 = vmatprep.subr.mxu0 0.0
    %87 = vmatpush1.msra.mxu0 %v48
    %88 = vmatprep.subr.mxu0 0.0
    %89 = vmatpush1.msra.mxu0 %v49
    %90 = vmatprep.subr.mxu0 0.0
    %91 = vmatpush1.msra.mxu0 0.0
    %92 = vmatprep.subr.mxu0 0.0
    %93 = vmatpush1.msra.mxu0 0.0
    %94 = vmatprep.subr.mxu0 0.0
    %95 = vmatpush1.msra.mxu0 0.0
    %96 = vmatprep.subr.mxu0 0.0
    %97 = vmatpush1.msra.mxu0 0.0
    %98 = vmatprep.subr.mxu0 0.0
    %99 = vmatpush1.msra.mxu0 0.0
    %100 = vmatprep.subr.mxu0 0.0
    %101 = vmatpush1.msra.mxu0 0.0
    %102 = vmatprep.subr.mxu0 0.0
    %103 = vmatpush1.msra.mxu0 0.0
    %104 = vmatprep.subr.mxu0 0.0
    %105 = vmatpush1.msra.mxu0 0.0
    %106 = vmatprep.subr.mxu0 0.0
    %107 = vmatpush1.msra.mxu0 0.0
    %108 = vmatprep.subr.mxu0 0.0
    %109 = vmatpush1.msra.mxu0 0.0
    %110 = vmatprep.subr.mxu0 0.0
    %111 = vmatpush1.msra.mxu0 0.0
    %112 = vmatprep.subr.mxu0 0.0
    %113 = vmatpush1.msra.mxu0 0.0
    %114 = vmatprep.subr.mxu0 0.0
    %115 = vmatpush1.msra.mxu0 0.0
    %116 = vmatprep.subr.mxu0 0.0
    %117 = vmatpush1.msra.mxu0 0.0
    %118 = vmatprep.subr.mxu0 0.0
    %119 = vmatpush1.msra.mxu0 0.0
    %120 = vmatprep.subr.mxu0 0.0
    %121 = vmatpush1.msra.mxu0 0.0
    %122 = vmatprep.subr.mxu0 0.0
    %123 = vmatpush1.msra.mxu0 0.0
    %124 = vmatprep.subr.mxu0 0.0
    %125 = vmatpush1.msra.mxu0 0.0
    %126 = vmatprep.subr.mxu0 0.0
    %127 = vmatpush1.msra.mxu0 0.0
    %128 = vmatprep.subr.mxu0 0.0
    %129 = vmatpush1.msra.mxu0 0.0
    %130 = vmatprep.subr.mxu0 0.0
    %131 = vmatpush1.msra.mxu0 0.0
    %132 = vmatprep.subr.mxu0 0.0
    %133 = vmatpush1.msra.mxu0 0.0
    %134 = vmatprep.subr.mxu0 0.0
    %135 = vmatpush1.msra.mxu0 0.0
    %136 = vmatprep.subr.mxu0 0.0
    %137 = vmatpush1.msra.mxu0 0.0
    %138 = vmatprep.subr.mxu0 0.0
    %139 = vmatpush1.msra.mxu0 0.0
    %140 = vmatprep.subr.mxu0 0.0
    %141 = vmatpush1.msra.mxu0 0.0
    %142 = vmatprep.subr.mxu0 0.0
    %143 = vmatpush1.msra.mxu0 0.0
    %144 = vmatprep.subr.mxu0 0.0
    %145 = vmatpush1.msra.mxu0 0.0
    %146 = vmatprep.mubr.f32.mxu0 0.0
    %147 = vmatmul.mubr.f32.gmra.mrb[0].mxu0 %v59
    %v148 = vpop.f32.mrb[0].mxu0
    %v149 = vadd.f32 %v55, %v148
    %v150 = vpop.f32.mrb[0].mxu0
    %151 = vmatprep.mubr.f32.mxu0 0.0
    %152 = vmatmul.mubr.f32.gmra.mrb[0].mxu0 %v62
    %v153 = vpop.f32.mrb[0].mxu0
    %v154 = vadd.f32 %v55, %v153
    %v155 = vpop.f32.mrb[0].mxu0
    %156 = vmatprep.mubr.f32.mxu0 0.0
    %157 = vmatmul.mubr.f32.gmra.mrb[0].mxu0 %v65
    %v158 = vpop.f32.mrb[0].mxu0
    %v159 = vadd.f32 %v55, %v158
    %v160 = vpop.f32.mrb[0].mxu0
    %161 = vmatprep.mubr.f32.mxu0 0.0
    %162 = vmatmul.mubr.f32.gmra.mrb[0].mxu0 %v68
    %v163 = vpop.f32.mrb[0].mxu0
    %v164 = vadd.f32 %v55, %v163
    %v165 = vpop.f32.mrb[0].mxu0
    %166 = vmatprep.mubr.f32.mxu0 0.0
    %167 = vmatmul.mubr.f32.gmra.mrb[0].mxu0 %v71
    %v168 = vpop.f32.mrb[0].mxu0
    %v169 = vadd.f32 %v55, %v168
    %v170 = vpop.f32.mrb[0].mxu0
    %171 = vmatprep.mubr.f32.mxu0 0.0
    %172 = vmatmul.mubr.f32.gmra.mrb[0].mxu0 %v74
    %v173 = vpop.f32.mrb[0].mxu0
    %v174 = vadd.f32 %v55, %v173
    %v175 = vpop.f32.mrb[0].mxu0
    %176 = vmatprep.mubr.f32.mxu0 0.0
    %177 = vmatmul.mubr.f32.gmra.mrb[0].mxu0 %v77
    %v178 = vpop.f32.mrb[0].mxu0
    %v179 = vadd.f32 %v55, %v178
    %v180 = vpop.f32.mrb[0].mxu0
    %181 = vmatprep.mubr.f32.mxu0 0.0
    %182 = vmatmul.mubr.f32.gmra.mrb[0].mxu0 %v80
    %v183 = vpop.f32.mrb[0].mxu0
    %v184 = vadd.f32 %v55, %v183
    %v185 = vpop.f32.mrb[0].mxu0
    %186 = vdwg.mxu0
    %v187 = vmax.f32 %v149, 0.0
    %v188 = vmax.f32 %v154, 0.0
    %v189 = vmax.f32 %v159, 0.0
    %v190 = vmax.f32 %v164, 0.0
    %v191 = vmax.f32 %v169, 0.0
    %v192 = vmax.f32 %v174, 0.0
    %v193 = vmax.f32 %v179, 0.0
    %v194 = vmax.f32 %v184, 0.0
    %v195 = vld [vmem:[#allocation2] sm:$0xff]
    %v196 = vld [vmem:[#allocation2 + $0x8] sm:$0xff]
    %v197 = vld [vmem:[#allocation2 + $0x10] sm:$0xff]
    %v198 = vld [vmem:[#allocation2 + $0x18] sm:$0xff]
    %v199 = vld [vmem:[#allocation2 + $0x20] sm:$0xff]
    %v200 = vld [vmem:[#allocation2 + $0x28] sm:$0xff]
    %v201 = vld [vmem:[#allocation2 + $0x30] sm:$0xff]
    %v202 = vld [vmem:[#allocation2 + $0x38] sm:$0xff]
    %v203 = vld [vmem:[#allocation2 + $0x40] sm:$0xff]
    %v204 = vld [vmem:[#allocation2 + $0x48] sm:$0xff]
    %v205 = vld [vmem:[#allocation2 + $0x50] sm:$0xff]
    %v206 = vld [vmem:[#allocation2 + $0x58] sm:$0xff]
    %v207 = vld [vmem:[#allocation2 + $0x60] sm:$0xff]
    %v208 = vld [vmem:[#allocation2 + $0x68] sm:$0xff]
    %v209 = vld [vmem:[#allocation2 + $0x70] sm:$0xff]
    %v210 = vld [vmem:[#allocation2 + $0x78] sm:$0xff]
    %v211 = vld [vmem:[%s4] sm:$0x1]
    %v213 = vlaneseq
    %v214 = vshrl.u32 %v213, 7
    %v215 = vsub.s32 0, %v214
    %v216 = vrot.slane %v211, %v215
    %218 = vmatprep.subr.mxu0 0.0
    %219 = vmatpush1.msra.mxu0 %v195
    %220 = vmatprep.subr.mxu0 0.0
    %221 = vmatpush1.msra.mxu0 %v196
    %222 = vmatprep.subr.mxu0 0.0
    %223 = vmatpush1.msra.mxu0 %v197
    %224 = vmatprep.subr.mxu0 0.0
    %225 = vmatpush1.msra.mxu0 %v198
    %226 = vmatprep.subr.mxu0 0.0
    %227 = vmatpush1.msra.mxu0 %v199
    %228 = vmatprep.subr.mxu0 0.0
    %229 = vmatpush1.msra.mxu0 %v200
    %230 = vmatprep.subr.mxu0 0.0
    %231 = vmatpush1.msra.mxu0 %v201
    %232 = vmatprep.subr.mxu0 0.0
    %233 = vmatpush1.msra.mxu0 %v202
    %234 = vmatprep.subr.mxu0 0.0
    %235 = vmatpush1.msra.mxu0 %v203
    %236 = vmatprep.subr.mxu0 0.0
    %237 = vmatpush1.msra.mxu0 %v204
    %238 = vmatprep.subr.mxu0 0.0
    %239 = vmatpush1.msra.mxu0 %v205
    %240 = vmatprep.subr.mxu0 0.0
    %241 = vmatpush1.msra.mxu0 %v206
    %242 = vmatprep.subr.mxu0 0.0
    %243 = vmatpush1.msra.mxu0 %v207
    %244 = vmatprep.subr.mxu0 0.0
    %245 = vmatpush1.msra.mxu0 %v208
    %246 = vmatprep.subr.mxu0 0.0
    %247 = vmatpush1.msra.mxu0 %v209
    %248 = vmatprep.subr.mxu0 0.0
    %249 = vmatpush1.msra.mxu0 %v210
    %250 = vmatprep.subr.mxu0 0.0
    %251 = vmatpush1.msra.mxu0 0.0
    %252 = vmatprep.subr.mxu0 0.0
    %253 = vmatpush1.msra.mxu0 0.0
    %254 = vmatprep.subr.mxu0 0.0
    %255 = vmatpush1.msra.mxu0 0.0
    %256 = vmatprep.subr.mxu0 0.0
    %257 = vmatpush1.msra.mxu0 0.0
    %258 = vmatprep.subr.mxu0 0.0
    %259 = vmatpush1.msra.mxu0 0.0
    %260 = vmatprep.subr.mxu0 0.0
    %261 = vmatpush1.msra.mxu0 0.0
    %262 = vmatprep.subr.mxu0 0.0
    %263 = vmatpush1.msra.mxu0 0.0
    %264 = vmatprep.subr.mxu0 0.0
    %265 = vmatpush1.msra.mxu0 0.0
    %266 = vmatprep.subr.mxu0 0.0
    %267 = vmatpush1.msra.mxu0 0.0
    %268 = vmatprep.subr.mxu0 0.0
    %269 = vmatpush1.msra.mxu0 0.0
    %270 = vmatprep.subr.mxu0 0.0
    %271 = vmatpush1.msra.mxu0 0.0
    %272 = vmatprep.subr.mxu0 0.0
    %273 = vmatpush1.msra.mxu0 0.0
    %274 = vmatprep.subr.mxu0 0.0
    %275 = vmatpush1.msra.mxu0 0.0
    %276 = vmatprep.subr.mxu0 0.0
    %277 = vmatpush1.msra.mxu0 0.0
    %278 = vmatprep.subr.mxu0 0.0
    %279 = vmatpush1.msra.mxu0 0.0
    %280 = vmatprep.subr.mxu0 0.0
    %281 = vmatpush1.msra.mxu0 0.0
    %282 = vmatprep.mubr.f32.mxu0 0.0
    %283 = vmatmul.mubr.f32.gmra.mrb[0].mxu0 %v187
    %v284 = vpop.f32.mrb[0].mxu0
    %v285 = vadd.f32 %v216, %v284
    %v286 = vpop.f32.mrb[0].mxu0
    %287 = vmatprep.mubr.f32.mxu0 0.0
    %288 = vmatmul.mubr.f32.gmra.mrb[0].mxu0 %v188
    %v289 = vpop.f32.mrb[0].mxu0
    %v290 = vadd.f32 %v216, %v289
    %v291 = vpop.f32.mrb[0].mxu0
    %292 = vmatprep.mubr.f32.mxu0 0.0
    %293 = vmatmul.mubr.f32.gmra.mrb[0].mxu0 %v189
    %v294 = vpop.f32.mrb[0].mxu0
    %v295 = vadd.f32 %v216, %v294
    %v296 = vpop.f32.mrb[0].mxu0
    %297 = vmatprep.mubr.f32.mxu0 0.0
    %298 = vmatmul.mubr.f32.gmra.mrb[0].mxu0 %v190
    %v299 = vpop.f32.mrb[0].mxu0
    %v300 = vadd.f32 %v216, %v299
    %v301 = vpop.f32.mrb[0].mxu0
    %302 = vmatprep.mubr.f32.mxu0 0.0
    %303 = vmatmul.mubr.f32.gmra.mrb[0].mxu0 %v191
    %v304 = vpop.f32.mrb[0].mxu0
    %v305 = vadd.f32 %v216, %v304
    %v306 = vpop.f32.mrb[0].mxu0
    %307 = vmatprep.mubr.f32.mxu0 0.0
    %308 = vmatmul.mubr.f32.gmra.mrb[0].mxu0 %v192
    %v309 = vpop.f32.mrb[0].mxu0
    %v310 = vadd.f32 %v216, %v309
    %v311 = vpop.f32.mrb[0].mxu0
    %312 = vmatprep.mubr.f32.mxu0 0.0
    %313 = vmatmul.mubr.f32.gmra.mrb[0].mxu0 %v193
    %v314 = vpop.f32.mrb[0].mxu0
    %v315 = vadd.f32 %v216, %v314
    %v316 = vpop.f32.mrb[0].mxu0
    %317 = vmatprep.mubr.f32.mxu0 0.0
    %318 = vmatmul.mubr.f32.gmra.mrb[0].mxu0 %v194
    %v319 = vpop.f32.mrb[0].mxu0
    %v320 = vadd.f32 %v216, %v319
    %v321 = vpop.f32.mrb[0].mxu0
    %322 = vdwg.mxu0
    %v323 = vld [vmem:[%s5] sm:$0xff]
    %v324 = vld [vmem:[%s5 + $0x8] sm:$0xff]
    %v325 = vld [vmem:[%s5 + $0x10] sm:$0xff]
    %v326 = vld [vmem:[%s5 + $0x18] sm:$0xff]
    %v327 = vld [vmem:[%s5 + $0x20] sm:$0xff]
    %v328 = vld [vmem:[%s5 + $0x28] sm:$0xff]
    %v329 = vld [vmem:[%s5 + $0x30] sm:$0xff]
    %v330 = vld [vmem:[%s5 + $0x38] sm:$0xff]
    %vm331 = vcmask 523264
    %v333 = vsel %vm331, %v323, 0
    %v336 = vsel %vm331, %v324, 0
    %v339 = vsel %vm331, %v325, 0
    %v342 = vsel %vm331, %v326, 0
    %v345 = vsel %vm331, %v327, 0
    %v348 = vsel %vm331, %v328, 0
    %v351 = vsel %vm331, %v329, 0
    %v354 = vsel %vm331, %v330, 0
    %356 = vmatprep.subr.mxu0 0.0
    %357 = vmatpush1.msra.mxu0 %v285
    %358 = vmatprep.subr.mxu0 0.0
    %359 = vmatpush1.msra.mxu0 %v290
    %360 = vmatprep.subr.mxu0 0.0
    %361 = vmatpush1.msra.mxu0 %v295
    %362 = vmatprep.subr.mxu0 0.0
    %363 = vmatpush1.msra.mxu0 %v300
    %364 = vmatprep.subr.mxu0 0.0
    %365 = vmatpush1.msra.mxu0 %v305
    %366 = vmatprep.subr.mxu0 0.0
    %367 = vmatpush1.msra.mxu0 %v310
    %368 = vmatprep.subr.mxu0 0.0
    %369 = vmatpush1.msra.mxu0 %v315
    %370 = vmatprep.subr.mxu0 0.0
    %371 = vmatpush1.msra.mxu0 %v320
    %372 = vmatprep.subr.mxu0 0.0
    %373 = vmatpush1.msra.mxu0 0.0
    %374 = vmatprep.subr.mxu0 0.0
    %375 = vmatpush1.msra.mxu0 0.0
    %376 = vmatprep.subr.mxu0 0.0
    %377 = vmatpush1.msra.mxu0 0.0
    %378 = vmatprep.subr.mxu0 0.0
    %379 = vmatpush1.msra.mxu0 0.0
    %380 = vmatprep.subr.mxu0 0.0
    %381 = vmatpush1.msra.mxu0 0.0
    %382 = vmatprep.subr.mxu0 0.0
    %383 = vmatpush1.msra.mxu0 0.0
    %384 = vmatprep.subr.mxu0 0.0
    %385 = vmatpush1.msra.mxu0 0.0
    %386 = vmatprep.subr.mxu0 0.0
    %387 = vmatpush1.msra.mxu0 0.0
    %388 = vmatprep.subr.mxu0 0.0
    %389 = vmatpush1.msra.mxu0 0.0
    %390 = vmatprep.subr.mxu0 0.0
    %391 = vmatpush1.msra.mxu0 0.0
    %392 = vmatprep.subr.mxu0 0.0
    %393 = vmatpush1.msra.mxu0 0.0
    %394 = vmatprep.subr.mxu0 0.0
    %395 = vmatpush1.msra.mxu0 0.0
    %396 = vmatprep.subr.mxu0 0.0
    %397 = vmatpush1.msra.mxu0 0.0
    %398 = vmatprep.subr.mxu0 0.0
    %399 = vmatpush1.msra.mxu0 0.0
    %400 = vmatprep.subr.mxu0 0.0
    %401 = vmatpush1.msra.mxu0 0.0
    %402 = vmatprep.subr.mxu0 0.0
    %403 = vmatpush1.msra.mxu0 0.0
    %404 = vmatprep.subr.mxu0 0.0
    %405 = vmatpush1.msra.mxu0 0.0
    %406 = vmatprep.subr.mxu0 0.0
    %407 = vmatpush1.msra.mxu0 0.0
    %408 = vmatprep.subr.mxu0 0.0
    %409 = vmatpush1.msra.mxu0 0.0
    %410 = vmatprep.subr.mxu0 0.0
    %411 = vmatpush1.msra.mxu0 0.0
    %412 = vmatprep.subr.mxu0 0.0
    %413 = vmatpush1.msra.mxu0 0.0
    %414 = vmatprep.subr.mxu0 0.0
    %415 = vmatpush1.msra.mxu0 0.0
    %416 = vmatprep.subr.mxu0 0.0
    %417 = vmatpush1.msra.mxu0 0.0
    %418 = vmatprep.subr.mxu0 0.0
    %419 = vmatpush1.msra.mxu0 0.0
    %420 = vmatprep.mubr.f32.mxu0 0.0
    %421 = vmatmul.mubr.f32.gmra.mrb[0].mxu0 %v333
    %v422 = vpop.f32.mrb[0].mxu0
    %v423 = vadd.f32 0.0, %v422
    %v424 = vpop.f32.mrb[0].mxu0
    %425 = vmatprep.mubr.f32.mxu0 0.0
    %426 = vmatmul.mubr.f32.gmra.mrb[0].mxu0 %v336
    %v427 = vpop.f32.mrb[0].mxu0
    %v428 = vadd.f32 0.0, %v427
    %v429 = vpop.f32.mrb[0].mxu0
    %430 = vmatprep.mubr.f32.mxu0 0.0
    %431 = vmatmul.mubr.f32.gmra.mrb[0].mxu0 %v339
    %v432 = vpop.f32.mrb[0].mxu0
    %v433 = vadd.f32 0.0, %v432
    %v434 = vpop.f32.mrb[0].mxu0
    %435 = vmatprep.mubr.f32.mxu0 0.0
    %436 = vmatmul.mubr.f32.gmra.mrb[0].mxu0 %v342
    %v437 = vpop.f32.mrb[0].mxu0
    %v438 = vadd.f32 0.0, %v437
    %v439 = vpop.f32.mrb[0].mxu0
    %440 = vmatprep.mubr.f32.mxu0 0.0
    %441 = vmatmul.mubr.f32.gmra.mrb[0].mxu0 %v345
    %v442 = vpop.f32.mrb[0].mxu0
    %v443 = vadd.f32 0.0, %v442
    %v444 = vpop.f32.mrb[0].mxu0
    %445 = vmatprep.mubr.f32.mxu0 0.0
    %446 = vmatmul.mubr.f32.gmra.mrb[0].mxu0 %v348
    %v447 = vpop.f32.mrb[0].mxu0
    %v448 = vadd.f32 0.0, %v447
    %v449 = vpop.f32.mrb[0].mxu0
    %450 = vmatprep.mubr.f32.mxu0 0.0
    %451 = vmatmul.mubr.f32.gmra.mrb[0].mxu0 %v351
    %v452 = vpop.f32.mrb[0].mxu0
    %v453 = vadd.f32 0.0, %v452
    %v454 = vpop.f32.mrb[0].mxu0
    %455 = vmatprep.mubr.f32.mxu0 0.0
    %456 = vmatmul.mubr.f32.gmra.mrb[0].mxu0 %v354
    %v457 = vpop.f32.mrb[0].mxu0
    %v458 = vadd.f32 0.0, %v457
    %v459 = vpop.f32.mrb[0].mxu0
    %460 = vdwg.mxu0
    %v461 = vmul.f32 %v423, 0.9
    %v462 = vmul.f32 %v428, 0.9
    %v463 = vmul.f32 %v433, 0.9
    %v464 = vmul.f32 %v438, 0.9
    %v465 = vmul.f32 %v443, 0.9
    %v466 = vmul.f32 %v448, 0.9
    %v467 = vmul.f32 %v453, 0.9
    %v468 = vmul.f32 %v458, 0.9
    %v469 = vmul.f32 %v285, 0.1
    %v470 = vmul.f32 %v290, 0.1
    %v471 = vmul.f32 %v295, 0.1
    %v472 = vmul.f32 %v300, 0.1
    %v473 = vmul.f32 %v305, 0.1
    %v474 = vmul.f32 %v310, 0.1
    %v475 = vmul.f32 %v315, 0.1
    %v476 = vmul.f32 %v320, 0.1
    %v477 = vadd.f32 %v461, %v469
    %v478 = vadd.f32 %v462, %v470
    %v479 = vadd.f32 %v463, %v471
    %v480 = vadd.f32 %v464, %v472
    %v481 = vadd.f32 %v465, %v473
    %v482 = vadd.f32 %v466, %v474
    %v483 = vadd.f32 %v467, %v475
    %v484 = vadd.f32 %v468, %v476
    %485 = vmatprep.subr.mxu0 0.0
    %486 = vmatpush1.msra.mxu0 %v477
    %487 = vmatprep.subr.mxu0 0.0
    %488 = vmatpush1.msra.mxu0 %v478
    %489 = vmatprep.subr.mxu0 0.0
    %490 = vmatpush1.msra.mxu0 %v479
    %491 = vmatprep.subr.mxu0 0.0
    %492 = vmatpush1.msra.mxu0 %v480
    %493 = vmatprep.subr.mxu0 0.0
    %494 = vmatpush1.msra.mxu0 %v481
    %495 = vmatprep.subr.mxu0 0.0
    %496 = vmatpush1.msra.mxu0 %v482
    %497 = vmatprep.subr.mxu0 0.0
    %498 = vmatpush1.msra.mxu0 %v483
    %499 = vmatprep.subr.mxu0 0.0
    %500 = vmatpush1.msra.mxu0 %v484
    %501 = vmatprep.subr.mxu0 0.0
    %502 = vmatpush1.msra.mxu0 0.0
    %503 = vmatprep.subr.mxu0 0.0
    %504 = vmatpush1.msra.mxu0 0.0
    %505 = vmatprep.subr.mxu0 0.0
    %506 = vmatpush1.msra.mxu0 0.0
    %507 = vmatprep.subr.mxu0 0.0
    %508 = vmatpush1.msra.mxu0 0.0
    %509 = vmatprep.subr.mxu0 0.0
    %510 = vmatpush1.msra.mxu0 0.0
    %511 = vmatprep.subr.mxu0 0.0
    %512 = vmatpush1.msra.mxu0 0.0
    %513 = vmatprep.subr.mxu0 0.0
    %514 = vmatpush1.msra.mxu0 0.0
    %515 = vmatprep.subr.mxu0 0.0
    %516 = vmatpush1.msra.mxu0 0.0
    %517 = vmatprep.subr.mxu0 0.0
    %518 = vmatpush1.msra.mxu0 0.0
    %519 = vmatprep.subr.mxu0 0.0
    %520 = vmatpush1.msra.mxu0 0.0
    %521 = vmatprep.subr.mxu0 0.0
    %522 = vmatpush1.msra.mxu0 0.0
    %523 = vmatprep.subr.mxu0 0.0
    %524 = vmatpush1.msra.mxu0 0.0
    %525 = vmatprep.subr.mxu0 0.0
    %526 = vmatpush1.msra.mxu0 0.0
    %527 = vmatprep.subr.mxu0 0.0
    %528 = vmatpush1.msra.mxu0 0.0
    %529 = vmatprep.subr.mxu0 0.0
    %530 = vmatpush1.msra.mxu0 0.0
    %531 = vmatprep.subr.mxu0 0.0
    %532 = vmatpush1.msra.mxu0 0.0
    %533 = vmatprep.subr.mxu0 0.0
    %534 = vmatpush1.msra.mxu0 0.0
    %535 = vmatprep.subr.mxu0 0.0
    %536 = vmatpush1.msra.mxu0 0.0
    %537 = vmatprep.subr.mxu0 0.0
    %538 = vmatpush1.msra.mxu0 0.0
    %539 = vmatprep.subr.mxu0 0.0
    %540 = vmatpush1.msra.mxu0 0.0
    %541 = vmatprep.subr.mxu0 0.0
    %542 = vmatpush1.msra.mxu0 0.0
    %543 = vmatprep.subr.mxu0 0.0
    %544 = vmatpush1.msra.mxu0 0.0
    %545 = vmatprep.subr.mxu0 0.0
    %546 = vmatpush1.msra.mxu0 0.0
    %547 = vmatprep.subr.mxu0 0.0
    %548 = vmatpush1.msra.mxu0 0.0
    %549 = vmatprep.mubr.f32.mxu0 0.0
    %550 = vmatmul.mubr.f32.gmra.mrb[0].mxu0 %v333
    %v551 = vpop.f32.mrb[0].mxu0
    %v552 = vadd.f32 0.0, %v551
    %v553 = vpop.f32.mrb[0].mxu0
    %554 = vmatprep.mubr.f32.mxu0 0.0
    %555 = vmatmul.mubr.f32.gmra.mrb[0].mxu0 %v336
    %v556 = vpop.f32.mrb[0].mxu0
    %v557 = vadd.f32 0.0, %v556
    %v558 = vpop.f32.mrb[0].mxu0
    %559 = vmatprep.mubr.f32.mxu0 0.0
    %560 = vmatmul.mubr.f32.gmra.mrb[0].mxu0 %v339
    %v561 = vpop.f32.mrb[0].mxu0
    %v562 = vadd.f32 0.0, %v561
    %v563 = vpop.f32.mrb[0].mxu0
    %564 = vmatprep.mubr.f32.mxu0 0.0
    %565 = vmatmul.mubr.f32.gmra.mrb[0].mxu0 %v342
    %v566 = vpop.f32.mrb[0].mxu0
    %v567 = vadd.f32 0.0, %v566
    %v568 = vpop.f32.mrb[0].mxu0
    %569 = vmatprep.mubr.f32.mxu0 0.0
    %570 = vmatmul.mubr.f32.gmra.mrb[0].mxu0 %v345
    %v571 = vpop.f32.mrb[0].mxu0
    %v572 = vadd.f32 0.0, %v571
    %v573 = vpop.f32.mrb[0].mxu0
    %574 = vmatprep.mubr.f32.mxu0 0.0
    %575 = vmatmul.mubr.f32.gmra.mrb[0].mxu0 %v348
    %v576 = vpop.f32.mrb[0].mxu0
    %v577 = vadd.f32 0.0, %v576
    %v578 = vpop.f32.mrb[0].mxu0
    %579 = vmatprep.mubr.f32.mxu0 0.0
    %580 = vmatmul.mubr.f32.gmra.mrb[0].mxu0 %v351
    %v581 = vpop.f32.mrb[0].mxu0
    %v582 = vadd.f32 0.0, %v581
    %v583 = vpop.f32.mrb[0].mxu0
    %584 = vmatprep.mubr.f32.mxu0 0.0
    %585 = vmatmul.mubr.f32.gmra.mrb[0].mxu0 %v354
    %v586 = vpop.f32.mrb[0].mxu0
    %v587 = vadd.f32 0.0, %v586
    %v588 = vpop.f32.mrb[0].mxu0
    %589 = vdwg.mxu0
    %v590 = vmul.f32 %v552, 0.9
    %v591 = vmul.f32 %v557, 0.9
    %v592 = vmul.f32 %v562, 0.9
    %v593 = vmul.f32 %v567, 0.9
    %v594 = vmul.f32 %v572, 0.9
    %v595 = vmul.f32 %v577, 0.9
    %v596 = vmul.f32 %v582, 0.9
    %v597 = vmul.f32 %v587, 0.9
    %v598 = vadd.f32 %v590, %v469
    %v599 = vadd.f32 %v591, %v470
    %v600 = vadd.f32 %v592, %v471
    %v601 = vadd.f32 %v593, %v472
    %v602 = vadd.f32 %v594, %v473
    %v603 = vadd.f32 %v595, %v474
    %v604 = vadd.f32 %v596, %v475
    %v605 = vadd.f32 %v597, %v476
    %606 = vmatprep.subr.mxu0 0.0
    %607 = vmatpush1.msra.mxu0 %v598
    %608 = vmatprep.subr.mxu0 0.0
    %609 = vmatpush1.msra.mxu0 %v599
    %610 = vmatprep.subr.mxu0 0.0
    %611 = vmatpush1.msra.mxu0 %v600
    %612 = vmatprep.subr.mxu0 0.0
    %613 = vmatpush1.msra.mxu0 %v601
    %614 = vmatprep.subr.mxu0 0.0
    %615 = vmatpush1.msra.mxu0 %v602
    %616 = vmatprep.subr.mxu0 0.0
    %617 = vmatpush1.msra.mxu0 %v603
    %618 = vmatprep.subr.mxu0 0.0
    %619 = vmatpush1.msra.mxu0 %v604
    %620 = vmatprep.subr.mxu0 0.0
    %621 = vmatpush1.msra.mxu0 %v605
    %622 = vmatprep.subr.mxu0 0.0
    %623 = vmatpush1.msra.mxu0 0.0
    %624 = vmatprep.subr.mxu0 0.0
    %625 = vmatpush1.msra.mxu0 0.0
    %626 = vmatprep.subr.mxu0 0.0
    %627 = vmatpush1.msra.mxu0 0.0
    %628 = vmatprep.subr.mxu0 0.0
    %629 = vmatpush1.msra.mxu0 0.0
    %630 = vmatprep.subr.mxu0 0.0
    %631 = vmatpush1.msra.mxu0 0.0
    %632 = vmatprep.subr.mxu0 0.0
    %633 = vmatpush1.msra.mxu0 0.0
    %634 = vmatprep.subr.mxu0 0.0
    %635 = vmatpush1.msra.mxu0 0.0
    %636 = vmatprep.subr.mxu0 0.0
    %637 = vmatpush1.msra.mxu0 0.0
    %638 = vmatprep.subr.mxu0 0.0
    %639 = vmatpush1.msra.mxu0 0.0
    %640 = vmatprep.subr.mxu0 0.0
    %641 = vmatpush1.msra.mxu0 0.0
    %642 = vmatprep.subr.mxu0 0.0
    %643 = vmatpush1.msra.mxu0 0.0
    %644 = vmatprep.subr.mxu0 0.0
    %645 = vmatpush1.msra.mxu0 0.0
    %646 = vmatprep.subr.mxu0 0.0
    %647 = vmatpush1.msra.mxu0 0.0
    %648 = vmatprep.subr.mxu0 0.0
    %649 = vmatpush1.msra.mxu0 0.0
    %650 = vmatprep.subr.mxu0 0.0
    %651 = vmatpush1.msra.mxu0 0.0
    %652 = vmatprep.subr.mxu0 0.0
    %653 = vmatpush1.msra.mxu0 0.0
    %654 = vmatprep.subr.mxu0 0.0
    %655 = vmatpush1.msra.mxu0 0.0
    %656 = vmatprep.subr.mxu0 0.0
    %657 = vmatpush1.msra.mxu0 0.0
    %658 = vmatprep.subr.mxu0 0.0
    %659 = vmatpush1.msra.mxu0 0.0
    %660 = vmatprep.subr.mxu0 0.0
    %661 = vmatpush1.msra.mxu0 0.0
    %662 = vmatprep.subr.mxu0 0.0
    %663 = vmatpush1.msra.mxu0 0.0
    %664 = vmatprep.subr.mxu0 0.0
    %665 = vmatpush1.msra.mxu0 0.0
    %666 = vmatprep.subr.mxu0 0.0
    %667 = vmatpush1.msra.mxu0 0.0
    %668 = vmatprep.subr.mxu0 0.0
    %669 = vmatpush1.msra.mxu0 0.0
    %670 = vmatprep.mubr.f32.mxu0 0.0
    %671 = vmatmul.mubr.f32.gmra.mrb[0].mxu0 %v333
    %v672 = vpop.f32.mrb[0].mxu0
    %v673 = vadd.f32 0.0, %v672
    %v674 = vpop.f32.mrb[0].mxu0
    %675 = vmatprep.mubr.f32.mxu0 0.0
    %676 = vmatmul.mubr.f32.gmra.mrb[0].mxu0 %v336
    %v677 = vpop.f32.mrb[0].mxu0
    %v678 = vadd.f32 0.0, %v677
    %v679 = vpop.f32.mrb[0].mxu0
    %680 = vmatprep.mubr.f32.mxu0 0.0
    %681 = vmatmul.mubr.f32.gmra.mrb[0].mxu0 %v339
    %v682 = vpop.f32.mrb[0].mxu0
    %v683 = vadd.f32 0.0, %v682
    %v684 = vpop.f32.mrb[0].mxu0
    %685 = vmatprep.mubr.f32.mxu0 0.0
    %686 = vmatmul.mubr.f32.gmra.mrb[0].mxu0 %v342
    %v687 = vpop.f32.mrb[0].mxu0
    %v688 = vadd.f32 0.0, %v687
    %v689 = vpop.f32.mrb[0].mxu0
    %690 = vmatprep.mubr.f32.mxu0 0.0
    %691 = vmatmul.mubr.f32.gmra.mrb[0].mxu0 %v345
    %v692 = vpop.f32.mrb[0].mxu0
    %v693 = vadd.f32 0.0, %v692
    %v694 = vpop.f32.mrb[0].mxu0
    %695 = vmatprep.mubr.f32.mxu0 0.0
    %696 = vmatmul.mubr.f32.gmra.mrb[0].mxu0 %v348
    %v697 = vpop.f32.mrb[0].mxu0
    %v698 = vadd.f32 0.0, %v697
    %v699 = vpop.f32.mrb[0].mxu0
    %700 = vmatprep.mubr.f32.mxu0 0.0
    %701 = vmatmul.mubr.f32.gmra.mrb[0].mxu0 %v351
    %v702 = vpop.f32.mrb[0].mxu0
    %v703 = vadd.f32 0.0, %v702
    %v704 = vpop.f32.mrb[0].mxu0
    %705 = vmatprep.mubr.f32.mxu0 0.0
    %706 = vmatmul.mubr.f32.gmra.mrb[0].mxu0 %v354
    %v707 = vpop.f32.mrb[0].mxu0
    %v708 = vadd.f32 0.0, %v707
    %v709 = vpop.f32.mrb[0].mxu0
    %710 = vdwg.mxu0
    %v711 = vmul.f32 %v673, 0.9
    %v712 = vmul.f32 %v678, 0.9
    %v713 = vmul.f32 %v683, 0.9
    %v714 = vmul.f32 %v688, 0.9
    %v715 = vmul.f32 %v693, 0.9
    %v716 = vmul.f32 %v698, 0.9
    %v717 = vmul.f32 %v703, 0.9
    %v718 = vmul.f32 %v708, 0.9
    %v719 = vadd.f32 %v711, %v469
    %v720 = vadd.f32 %v712, %v470
    %v721 = vadd.f32 %v713, %v471
    %v722 = vadd.f32 %v714, %v472
    %v723 = vadd.f32 %v715, %v473
    %v724 = vadd.f32 %v716, %v474
    %v725 = vadd.f32 %v717, %v475
    %v726 = vadd.f32 %v718, %v476
    %727 = vmatprep.subr.mxu0 0.0
    %728 = vmatpush1.msra.mxu0 %v719
    %729 = vmatprep.subr.mxu0 0.0
    %730 = vmatpush1.msra.mxu0 %v720
    %731 = vmatprep.subr.mxu0 0.0
    %732 = vmatpush1.msra.mxu0 %v721
    %733 = vmatprep.subr.mxu0 0.0
    %734 = vmatpush1.msra.mxu0 %v722
    %735 = vmatprep.subr.mxu0 0.0
    %736 = vmatpush1.msra.mxu0 %v723
    %737 = vmatprep.subr.mxu0 0.0
    %738 = vmatpush1.msra.mxu0 %v724
    %739 = vmatprep.subr.mxu0 0.0
    %740 = vmatpush1.msra.mxu0 %v725
    %741 = vmatprep.subr.mxu0 0.0
    %742 = vmatpush1.msra.mxu0 %v726
    %743 = vmatprep.subr.mxu0 0.0
    %744 = vmatpush1.msra.mxu0 0.0
    %745 = vmatprep.subr.mxu0 0.0
    %746 = vmatpush1.msra.mxu0 0.0
    %747 = vmatprep.subr.mxu0 0.0
    %748 = vmatpush1.msra.mxu0 0.0
    %749 = vmatprep.subr.mxu0 0.0
    %750 = vmatpush1.msra.mxu0 0.0
    %751 = vmatprep.subr.mxu0 0.0
    %752 = vmatpush1.msra.mxu0 0.0
    %753 = vmatprep.subr.mxu0 0.0
    %754 = vmatpush1.msra.mxu0 0.0
    %755 = vmatprep.subr.mxu0 0.0
    %756 = vmatpush1.msra.mxu0 0.0
    %757 = vmatprep.subr.mxu0 0.0
    %758 = vmatpush1.msra.mxu0 0.0
    %759 = vmatprep.subr.mxu0 0.0
    %760 = vmatpush1.msra.mxu0 0.0
    %761 = vmatprep.subr.mxu0 0.0
    %762 = vmatpush1.msra.mxu0 0.0
    %763 = vmatprep.subr.mxu0 0.0
    %764 = vmatpush1.msra.mxu0 0.0
    %765 = vmatprep.subr.mxu0 0.0
    %766 = vmatpush1.msra.mxu0 0.0
    %767 = vmatprep.subr.mxu0 0.0
    %768 = vmatpush1.msra.mxu0 0.0
    %769 = vmatprep.subr.mxu0 0.0
    %770 = vmatpush1.msra.mxu0 0.0
    %771 = vmatprep.subr.mxu0 0.0
    %772 = vmatpush1.msra.mxu0 0.0
    %773 = vmatprep.subr.mxu0 0.0
    %774 = vmatpush1.msra.mxu0 0.0
    %775 = vmatprep.subr.mxu0 0.0
    %776 = vmatpush1.msra.mxu0 0.0
    %777 = vmatprep.subr.mxu0 0.0
    %778 = vmatpush1.msra.mxu0 0.0
    %779 = vmatprep.subr.mxu0 0.0
    %780 = vmatpush1.msra.mxu0 0.0
    %781 = vmatprep.subr.mxu0 0.0
    %782 = vmatpush1.msra.mxu0 0.0
    %783 = vmatprep.subr.mxu0 0.0
    %784 = vmatpush1.msra.mxu0 0.0
    %785 = vmatprep.subr.mxu0 0.0
    %786 = vmatpush1.msra.mxu0 0.0
    %787 = vmatprep.subr.mxu0 0.0
    %788 = vmatpush1.msra.mxu0 0.0
    %789 = vmatprep.subr.mxu0 0.0
    %790 = vmatpush1.msra.mxu0 0.0
    %791 = vmatprep.mubr.f32.mxu0 0.0
    %792 = vmatmul.mubr.f32.gmra.mrb[0].mxu0 %v333
    %v793 = vpop.f32.mrb[0].mxu0
    %v794 = vadd.f32 0.0, %v793
    %v795 = vpop.f32.mrb[0].mxu0
    %796 = vmatprep.mubr.f32.mxu0 0.0
    %797 = vmatmul.mubr.f32.gmra.mrb[0].mxu0 %v336
    %v798 = vpop.f32.mrb[0].mxu0
    %v799 = vadd.f32 0.0, %v798
    %v800 = vpop.f32.mrb[0].mxu0
    %801 = vmatprep.mubr.f32.mxu0 0.0
    %802 = vmatmul.mubr.f32.gmra.mrb[0].mxu0 %v339
    %v803 = vpop.f32.mrb[0].mxu0
    %v804 = vadd.f32 0.0, %v803
    %v805 = vpop.f32.mrb[0].mxu0
    %806 = vmatprep.mubr.f32.mxu0 0.0
    %807 = vmatmul.mubr.f32.gmra.mrb[0].mxu0 %v342
    %v808 = vpop.f32.mrb[0].mxu0
    %v809 = vadd.f32 0.0, %v808
    %v810 = vpop.f32.mrb[0].mxu0
    %811 = vmatprep.mubr.f32.mxu0 0.0
    %812 = vmatmul.mubr.f32.gmra.mrb[0].mxu0 %v345
    %v813 = vpop.f32.mrb[0].mxu0
    %v814 = vadd.f32 0.0, %v813
    %v815 = vpop.f32.mrb[0].mxu0
    %816 = vmatprep.mubr.f32.mxu0 0.0
    %817 = vmatmul.mubr.f32.gmra.mrb[0].mxu0 %v348
    %v818 = vpop.f32.mrb[0].mxu0
    %v819 = vadd.f32 0.0, %v818
    %v820 = vpop.f32.mrb[0].mxu0
    %821 = vmatprep.mubr.f32.mxu0 0.0
    %822 = vmatmul.mubr.f32.gmra.mrb[0].mxu0 %v351
    %v823 = vpop.f32.mrb[0].mxu0
    %v824 = vadd.f32 0.0, %v823
    %v825 = vpop.f32.mrb[0].mxu0
    %826 = vmatprep.mubr.f32.mxu0 0.0
    %827 = vmatmul.mubr.f32.gmra.mrb[0].mxu0 %v354
    %v828 = vpop.f32.mrb[0].mxu0
    %v829 = vadd.f32 0.0, %v828
    %v830 = vpop.f32.mrb[0].mxu0
    %831 = vdwg.mxu0
    %v832 = vmul.f32 %v794, 0.9
    %v833 = vmul.f32 %v799, 0.9
    %v834 = vmul.f32 %v804, 0.9
    %v835 = vmul.f32 %v809, 0.9
    %v836 = vmul.f32 %v814, 0.9
    %v837 = vmul.f32 %v819, 0.9
    %v838 = vmul.f32 %v824, 0.9
    %v839 = vmul.f32 %v829, 0.9
    %v840 = vadd.f32 %v832, %v469
    %v841 = vadd.f32 %v833, %v470
    %v842 = vadd.f32 %v834, %v471
    %v843 = vadd.f32 %v835, %v472
    %v844 = vadd.f32 %v836, %v473
    %v845 = vadd.f32 %v837, %v474
    %v846 = vadd.f32 %v838, %v475
    %v847 = vadd.f32 %v839, %v476
    %848 = vmatprep.subr.mxu0 0.0
    %849 = vmatpush1.msra.mxu0 %v840
    %850 = vmatprep.subr.mxu0 0.0
    %851 = vmatpush1.msra.mxu0 %v841
    %852 = vmatprep.subr.mxu0 0.0
    %853 = vmatpush1.msra.mxu0 %v842
    %854 = vmatprep.subr.mxu0 0.0
    %855 = vmatpush1.msra.mxu0 %v843
    %856 = vmatprep.subr.mxu0 0.0
    %857 = vmatpush1.msra.mxu0 %v844
    %858 = vmatprep.subr.mxu0 0.0
    %859 = vmatpush1.msra.mxu0 %v845
    %860 = vmatprep.subr.mxu0 0.0
    %861 = vmatpush1.msra.mxu0 %v846
    %862 = vmatprep.subr.mxu0 0.0
    %863 = vmatpush1.msra.mxu0 %v847
    %864 = vmatprep.subr.mxu0 0.0
    %865 = vmatpush1.msra.mxu0 0.0
    %866 = vmatprep.subr.mxu0 0.0
    %867 = vmatpush1.msra.mxu0 0.0
    %868 = vmatprep.subr.mxu0 0.0
    %869 = vmatpush1.msra.mxu0 0.0
    %870 = vmatprep.subr.mxu0 0.0
    %871 = vmatpush1.msra.mxu0 0.0
    %872 = vmatprep.subr.mxu0 0.0
    %873 = vmatpush1.msra.mxu0 0.0
    %874 = vmatprep.subr.mxu0 0.0
    %875 = vmatpush1.msra.mxu0 0.0
    %876 = vmatprep.subr.mxu0 0.0
    %877 = vmatpush1.msra.mxu0 0.0
    %878 = vmatprep.subr.mxu0 0.0
    %879 = vmatpush1.msra.mxu0 0.0
    %880 = vmatprep.subr.mxu0 0.0
    %881 = vmatpush1.msra.mxu0 0.0
    %882 = vmatprep.subr.mxu0 0.0
    %883 = vmatpush1.msra.mxu0 0.0
    %884 = vmatprep.subr.mxu0 0.0
    %885 = vmatpush1.msra.mxu0 0.0
    %886 = vmatprep.subr.mxu0 0.0
    %887 = vmatpush1.msra.mxu0 0.0
    %888 = vmatprep.subr.mxu0 0.0
    %889 = vmatpush1.msra.mxu0 0.0
    %890 = vmatprep.subr.mxu0 0.0
    %891 = vmatpush1.msra.mxu0 0.0
    %892 = vmatprep.subr.mxu0 0.0
    %893 = vmatpush1.msra.mxu0 0.0
    %894 = vmatprep.subr.mxu0 0.0
    %895 = vmatpush1.msra.mxu0 0.0
    %896 = vmatprep.subr.mxu0 0.0
    %897 = vmatpush1.msra.mxu0 0.0
    %898 = vmatprep.subr.mxu0 0.0
    %899 = vmatpush1.msra.mxu0 0.0
    %900 = vmatprep.subr.mxu0 0.0
    %901 = vmatpush1.msra.mxu0 0.0
    %902 = vmatprep.subr.mxu0 0.0
    %903 = vmatpush1.msra.mxu0 0.0
    %904 = vmatprep.subr.mxu0 0.0
    %905 = vmatpush1.msra.mxu0 0.0
    %906 = vmatprep.subr.mxu0 0.0
    %907 = vmatpush1.msra.mxu0 0.0
    %908 = vmatprep.subr.mxu0 0.0
    %909 = vmatpush1.msra.mxu0 0.0
    %910 = vmatprep.subr.mxu0 0.0
    %911 = vmatpush1.msra.mxu0 0.0
    %912 = vmatprep.mubr.f32.mxu0 0.0
    %913 = vmatmul.mubr.f32.gmra.mrb[0].mxu0 %v333
    %v914 = vpop.f32.mrb[0].mxu0
    %v915 = vadd.f32 0.0, %v914
    %v916 = vpop.f32.mrb[0].mxu0
    %917 = vmatprep.mubr.f32.mxu0 0.0
    %918 = vmatmul.mubr.f32.gmra.mrb[0].mxu0 %v336
    %v919 = vpop.f32.mrb[0].mxu0
    %v920 = vadd.f32 0.0, %v919
    %v921 = vpop.f32.mrb[0].mxu0
    %922 = vmatprep.mubr.f32.mxu0 0.0
    %923 = vmatmul.mubr.f32.gmra.mrb[0].mxu0 %v339
    %v924 = vpop.f32.mrb[0].mxu0
    %v925 = vadd.f32 0.0, %v924
    %v926 = vpop.f32.mrb[0].mxu0
    %927 = vmatprep.mubr.f32.mxu0 0.0
    %928 = vmatmul.mubr.f32.gmra.mrb[0].mxu0 %v342
    %v929 = vpop.f32.mrb[0].mxu0
    %v930 = vadd.f32 0.0, %v929
    %v931 = vpop.f32.mrb[0].mxu0
    %932 = vmatprep.mubr.f32.mxu0 0.0
    %933 = vmatmul.mubr.f32.gmra.mrb[0].mxu0 %v345
    %v934 = vpop.f32.mrb[0].mxu0
    %v935 = vadd.f32 0.0, %v934
    %v936 = vpop.f32.mrb[0].mxu0
    %937 = vmatprep.mubr.f32.mxu0 0.0
    %938 = vmatmul.mubr.f32.gmra.mrb[0].mxu0 %v348
    %v939 = vpop.f32.mrb[0].mxu0
    %v940 = vadd.f32 0.0, %v939
    %v941 = vpop.f32.mrb[0].mxu0
    %942 = vmatprep.mubr.f32.mxu0 0.0
    %943 = vmatmul.mubr.f32.gmra.mrb[0].mxu0 %v351
    %v944 = vpop.f32.mrb[0].mxu0
    %v945 = vadd.f32 0.0, %v944
    %v946 = vpop.f32.mrb[0].mxu0
    %947 = vmatprep.mubr.f32.mxu0 0.0
    %948 = vmatmul.mubr.f32.gmra.mrb[0].mxu0 %v354
    %v949 = vpop.f32.mrb[0].mxu0
    %v950 = vadd.f32 0.0, %v949
    %v951 = vpop.f32.mrb[0].mxu0
    %952 = vdwg.mxu0
    %v953 = vmul.f32 %v915, 0.9
    %v954 = vmul.f32 %v920, 0.9
    %v955 = vmul.f32 %v925, 0.9
    %v956 = vmul.f32 %v930, 0.9
    %v957 = vmul.f32 %v935, 0.9
    %v958 = vmul.f32 %v940, 0.9
    %v959 = vmul.f32 %v945, 0.9
    %v960 = vmul.f32 %v950, 0.9
    %v961 = vadd.f32 %v953, %v469
    %v962 = vadd.f32 %v954, %v470
    %v963 = vadd.f32 %v955, %v471
    %v964 = vadd.f32 %v956, %v472
    %v965 = vadd.f32 %v957, %v473
    %v966 = vadd.f32 %v958, %v474
    %v967 = vadd.f32 %v959, %v475
    %v968 = vadd.f32 %v960, %v476
    %969 = vmatprep.subr.mxu0 0.0
    %970 = vmatpush1.msra.mxu0 %v961
    %971 = vmatprep.subr.mxu0 0.0
    %972 = vmatpush1.msra.mxu0 %v962
    %973 = vmatprep.subr.mxu0 0.0
    %974 = vmatpush1.msra.mxu0 %v963
    %975 = vmatprep.subr.mxu0 0.0
    %976 = vmatpush1.msra.mxu0 %v964
    %977 = vmatprep.subr.mxu0 0.0
    %978 = vmatpush1.msra.mxu0 %v965
    %979 = vmatprep.subr.mxu0 0.0
    %980 = vmatpush1.msra.mxu0 %v966
    %981 = vmatprep.subr.mxu0 0.0
    %982 = vmatpush1.msra.mxu0 %v967
    %983 = vmatprep.subr.mxu0 0.0
    %984 = vmatpush1.msra.mxu0 %v968
    %985 = vmatprep.subr.mxu0 0.0
    %986 = vmatpush1.msra.mxu0 0.0
    %987 = vmatprep.subr.mxu0 0.0
    %988 = vmatpush1.msra.mxu0 0.0
    %989 = vmatprep.subr.mxu0 0.0
    %990 = vmatpush1.msra.mxu0 0.0
    %991 = vmatprep.subr.mxu0 0.0
    %992 = vmatpush1.msra.mxu0 0.0
    %993 = vmatprep.subr.mxu0 0.0
    %994 = vmatpush1.msra.mxu0 0.0
    %995 = vmatprep.subr.mxu0 0.0
    %996 = vmatpush1.msra.mxu0 0.0
    %997 = vmatprep.subr.mxu0 0.0
    %998 = vmatpush1.msra.mxu0 0.0
    %999 = vmatprep.subr.mxu0 0.0
    %1000 = vmatpush1.msra.mxu0 0.0
    %1001 = vmatprep.subr.mxu0 0.0
    %1002 = vmatpush1.msra.mxu0 0.0
    %1003 = vmatprep.subr.mxu0 0.0
    %1004 = vmatpush1.msra.mxu0 0.0
    %1005 = vmatprep.subr.mxu0 0.0
    %1006 = vmatpush1.msra.mxu0 0.0
    %1007 = vmatprep.subr.mxu0 0.0
    %1008 = vmatpush1.msra.mxu0 0.0
    %1009 = vmatprep.subr.mxu0 0.0
    %1010 = vmatpush1.msra.mxu0 0.0
    %1011 = vmatprep.subr.mxu0 0.0
    %1012 = vmatpush1.msra.mxu0 0.0
    %1013 = vmatprep.subr.mxu0 0.0
    %1014 = vmatpush1.msra.mxu0 0.0
    %1015 = vmatprep.subr.mxu0 0.0
    %1016 = vmatpush1.msra.mxu0 0.0
    %1017 = vmatprep.subr.mxu0 0.0
    %1018 = vmatpush1.msra.mxu0 0.0
    %1019 = vmatprep.subr.mxu0 0.0
    %1020 = vmatpush1.msra.mxu0 0.0
    %1021 = vmatprep.subr.mxu0 0.0
    %1022 = vmatpush1.msra.mxu0 0.0
    %1023 = vmatprep.subr.mxu0 0.0
    %1024 = vmatpush1.msra.mxu0 0.0
    %1025 = vmatprep.subr.mxu0 0.0
    %1026 = vmatpush1.msra.mxu0 0.0
    %1027 = vmatprep.subr.mxu0 0.0
    %1028 = vmatpush1.msra.mxu0 0.0
    %1029 = vmatprep.subr.mxu0 0.0
    %1030 = vmatpush1.msra.mxu0 0.0
    %1031 = vmatprep.subr.mxu0 0.0
    %1032 = vmatpush1.msra.mxu0 0.0
    %1033 = vmatprep.mubr.f32.mxu0 0.0
    %1034 = vmatmul.mubr.f32.gmra.mrb[0].mxu0 %v333
    %v1035 = vpop.f32.mrb[0].mxu0
    %v1036 = vadd.f32 0.0, %v1035
    %v1037 = vpop.f32.mrb[0].mxu0
    %1038 = vmatprep.mubr.f32.mxu0 0.0
    %1039 = vmatmul.mubr.f32.gmra.mrb[0].mxu0 %v336
    %v1040 = vpop.f32.mrb[0].mxu0
    %v1041 = vadd.f32 0.0, %v1040
    %v1042 = vpop.f32.mrb[0].mxu0
    %1043 = vmatprep.mubr.f32.mxu0 0.0
    %1044 = vmatmul.mubr.f32.gmra.mrb[0].mxu0 %v339
    %v1045 = vpop.f32.mrb[0].mxu0
    %v1046 = vadd.f32 0.0, %v1045
    %v1047 = vpop.f32.mrb[0].mxu0
    %1048 = vmatprep.mubr.f32.mxu0 0.0
    %1049 = vmatmul.mubr.f32.gmra.mrb[0].mxu0 %v342
    %v1050 = vpop.f32.mrb[0].mxu0
    %v1051 = vadd.f32 0.0, %v1050
    %v1052 = vpop.f32.mrb[0].mxu0
    %1053 = vmatprep.mubr.f32.mxu0 0.0
    %1054 = vmatmul.mubr.f32.gmra.mrb[0].mxu0 %v345
    %v1055 = vpop.f32.mrb[0].mxu0
    %v1056 = vadd.f32 0.0, %v1055
    %v1057 = vpop.f32.mrb[0].mxu0
    %1058 = vmatprep.mubr.f32.mxu0 0.0
    %1059 = vmatmul.mubr.f32.gmra.mrb[0].mxu0 %v348
    %v1060 = vpop.f32.mrb[0].mxu0
    %v1061 = vadd.f32 0.0, %v1060
    %v1062 = vpop.f32.mrb[0].mxu0
    %1063 = vmatprep.mubr.f32.mxu0 0.0
    %1064 = vmatmul.mubr.f32.gmra.mrb[0].mxu0 %v351
    %v1065 = vpop.f32.mrb[0].mxu0
    %v1066 = vadd.f32 0.0, %v1065
    %v1067 = vpop.f32.mrb[0].mxu0
    %1068 = vmatprep.mubr.f32.mxu0 0.0
    %1069 = vmatmul.mubr.f32.gmra.mrb[0].mxu0 %v354
    %v1070 = vpop.f32.mrb[0].mxu0
    %v1071 = vadd.f32 0.0, %v1070
    %v1072 = vpop.f32.mrb[0].mxu0
    %1073 = vdwg.mxu0
    %v1074 = vmul.f32 %v1036, 0.9
    %v1075 = vmul.f32 %v1041, 0.9
    %v1076 = vmul.f32 %v1046, 0.9
    %v1077 = vmul.f32 %v1051, 0.9
    %v1078 = vmul.f32 %v1056, 0.9
    %v1079 = vmul.f32 %v1061, 0.9
    %v1080 = vmul.f32 %v1066, 0.9
    %v1081 = vmul.f32 %v1071, 0.9
    %v1082 = vadd.f32 %v1074, %v469
    %v1083 = vadd.f32 %v1075, %v470
    %v1084 = vadd.f32 %v1076, %v471
    %v1085 = vadd.f32 %v1077, %v472
    %v1086 = vadd.f32 %v1078, %v473
    %v1087 = vadd.f32 %v1079, %v474
    %v1088 = vadd.f32 %v1080, %v475
    %v1089 = vadd.f32 %v1081, %v476
    %1090 = vmatprep.subr.mxu0 0.0
    %1091 = vmatpush1.msra.mxu0 %v1082
    %1092 = vmatprep.subr.mxu0 0.0
    %1093 = vmatpush1.msra.mxu0 %v1083
    %1094 = vmatprep.subr.mxu0 0.0
    %1095 = vmatpush1.msra.mxu0 %v1084
    %1096 = vmatprep.subr.mxu0 0.0
    %1097 = vmatpush1.msra.mxu0 %v1085
    %1098 = vmatprep.subr.mxu0 0.0
    %1099 = vmatpush1.msra.mxu0 %v1086
    %1100 = vmatprep.subr.mxu0 0.0
    %1101 = vmatpush1.msra.mxu0 %v1087
    %1102 = vmatprep.subr.mxu0 0.0
    %1103 = vmatpush1.msra.mxu0 %v1088
    %1104 = vmatprep.subr.mxu0 0.0
    %1105 = vmatpush1.msra.mxu0 %v1089
    %1106 = vmatprep.subr.mxu0 0.0
    %1107 = vmatpush1.msra.mxu0 0.0
    %1108 = vmatprep.subr.mxu0 0.0
    %1109 = vmatpush1.msra.mxu0 0.0
    %1110 = vmatprep.subr.mxu0 0.0
    %1111 = vmatpush1.msra.mxu0 0.0
    %1112 = vmatprep.subr.mxu0 0.0
    %1113 = vmatpush1.msra.mxu0 0.0
    %1114 = vmatprep.subr.mxu0 0.0
    %1115 = vmatpush1.msra.mxu0 0.0
    %1116 = vmatprep.subr.mxu0 0.0
    %1117 = vmatpush1.msra.mxu0 0.0
    %1118 = vmatprep.subr.mxu0 0.0
    %1119 = vmatpush1.msra.mxu0 0.0
    %1120 = vmatprep.subr.mxu0 0.0
    %1121 = vmatpush1.msra.mxu0 0.0
    %1122 = vmatprep.subr.mxu0 0.0
    %1123 = vmatpush1.msra.mxu0 0.0
    %1124 = vmatprep.subr.mxu0 0.0
    %1125 = vmatpush1.msra.mxu0 0.0
    %1126 = vmatprep.subr.mxu0 0.0
    %1127 = vmatpush1.msra.mxu0 0.0
    %1128 = vmatprep.subr.mxu0 0.0
    %1129 = vmatpush1.msra.mxu0 0.0
    %1130 = vmatprep.subr.mxu0 0.0
    %1131 = vmatpush1.msra.mxu0 0.0
    %1132 = vmatprep.subr.mxu0 0.0
    %1133 = vmatpush1.msra.mxu0 0.0
    %1134 = vmatprep.subr.mxu0 0.0
    %1135 = vmatpush1.msra.mxu0 0.0
    %1136 = vmatprep.subr.mxu0 0.0
    %1137 = vmatpush1.msra.mxu0 0.0
    %1138 = vmatprep.subr.mxu0 0.0
    %1139 = vmatpush1.msra.mxu0 0.0
    %1140 = vmatprep.subr.mxu0 0.0
    %1141 = vmatpush1.msra.mxu0 0.0
    %1142 = vmatprep.subr.mxu0 0.0
    %1143 = vmatpush1.msra.mxu0 0.0
    %1144 = vmatprep.subr.mxu0 0.0
    %1145 = vmatpush1.msra.mxu0 0.0
    %1146 = vmatprep.subr.mxu0 0.0
    %1147 = vmatpush1.msra.mxu0 0.0
    %1148 = vmatprep.subr.mxu0 0.0
    %1149 = vmatpush1.msra.mxu0 0.0
    %1150 = vmatprep.subr.mxu0 0.0
    %1151 = vmatpush1.msra.mxu0 0.0
    %1152 = vmatprep.subr.mxu0 0.0
    %1153 = vmatpush1.msra.mxu0 0.0
    %1154 = vmatprep.mubr.f32.mxu0 0.0
    %1155 = vmatmul.mubr.f32.gmra.mrb[0].mxu0 %v333
    %v1156 = vpop.f32.mrb[0].mxu0
    %v1157 = vadd.f32 0.0, %v1156
    %v1158 = vpop.f32.mrb[0].mxu0
    %1159 = vmatprep.mubr.f32.mxu0 0.0
    %1160 = vmatmul.mubr.f32.gmra.mrb[0].mxu0 %v336
    %v1161 = vpop.f32.mrb[0].mxu0
    %v1162 = vadd.f32 0.0, %v1161
    %v1163 = vpop.f32.mrb[0].mxu0
    %1164 = vmatprep.mubr.f32.mxu0 0.0
    %1165 = vmatmul.mubr.f32.gmra.mrb[0].mxu0 %v339
    %v1166 = vpop.f32.mrb[0].mxu0
    %v1167 = vadd.f32 0.0, %v1166
    %v1168 = vpop.f32.mrb[0].mxu0
    %1169 = vmatprep.mubr.f32.mxu0 0.0
    %1170 = vmatmul.mubr.f32.gmra.mrb[0].mxu0 %v342
    %v1171 = vpop.f32.mrb[0].mxu0
    %v1172 = vadd.f32 0.0, %v1171
    %v1173 = vpop.f32.mrb[0].mxu0
    %1174 = vmatprep.mubr.f32.mxu0 0.0
    %1175 = vmatmul.mubr.f32.gmra.mrb[0].mxu0 %v345
    %v1176 = vpop.f32.mrb[0].mxu0
    %v1177 = vadd.f32 0.0, %v1176
    %v1178 = vpop.f32.mrb[0].mxu0
    %1179 = vmatprep.mubr.f32.mxu0 0.0
    %1180 = vmatmul.mubr.f32.gmra.mrb[0].mxu0 %v348
    %v1181 = vpop.f32.mrb[0].mxu0
    %v1182 = vadd.f32 0.0, %v1181
    %v1183 = vpop.f32.mrb[0].mxu0
    %1184 = vmatprep.mubr.f32.mxu0 0.0
    %1185 = vmatmul.mubr.f32.gmra.mrb[0].mxu0 %v351
    %v1186 = vpop.f32.mrb[0].mxu0
    %v1187 = vadd.f32 0.0, %v1186
    %v1188 = vpop.f32.mrb[0].mxu0
    %1189 = vmatprep.mubr.f32.mxu0 0.0
    %1190 = vmatmul.mubr.f32.gmra.mrb[0].mxu0 %v354
    %v1191 = vpop.f32.mrb[0].mxu0
    %v1192 = vadd.f32 0.0, %v1191
    %v1193 = vpop.f32.mrb[0].mxu0
    %1194 = vdwg.mxu0
    %v1195 = vmul.f32 %v1157, 0.9
    %v1196 = vmul.f32 %v1162, 0.9
    %v1197 = vmul.f32 %v1167, 0.9
    %v1198 = vmul.f32 %v1172, 0.9
    %v1199 = vmul.f32 %v1177, 0.9
    %v1200 = vmul.f32 %v1182, 0.9
    %v1201 = vmul.f32 %v1187, 0.9
    %v1202 = vmul.f32 %v1192, 0.9
    %v1203 = vadd.f32 %v1195, %v469
    %v1204 = vadd.f32 %v1196, %v470
    %v1205 = vadd.f32 %v1197, %v471
    %v1206 = vadd.f32 %v1198, %v472
    %v1207 = vadd.f32 %v1199, %v473
    %v1208 = vadd.f32 %v1200, %v474
    %v1209 = vadd.f32 %v1201, %v475
    %v1210 = vadd.f32 %v1202, %v476
    %1211 = vmatprep.subr.mxu0 0.0
    %1212 = vmatpush1.msra.mxu0 %v1203
    %1213 = vmatprep.subr.mxu0 0.0
    %1214 = vmatpush1.msra.mxu0 %v1204
    %1215 = vmatprep.subr.mxu0 0.0
    %1216 = vmatpush1.msra.mxu0 %v1205
    %1217 = vmatprep.subr.mxu0 0.0
    %1218 = vmatpush1.msra.mxu0 %v1206
    %1219 = vmatprep.subr.mxu0 0.0
    %1220 = vmatpush1.msra.mxu0 %v1207
    %1221 = vmatprep.subr.mxu0 0.0
    %1222 = vmatpush1.msra.mxu0 %v1208
    %1223 = vmatprep.subr.mxu0 0.0
    %1224 = vmatpush1.msra.mxu0 %v1209
    %1225 = vmatprep.subr.mxu0 0.0
    %1226 = vmatpush1.msra.mxu0 %v1210
    %1227 = vmatprep.subr.mxu0 0.0
    %1228 = vmatpush1.msra.mxu0 0.0
    %1229 = vmatprep.subr.mxu0 0.0
    %1230 = vmatpush1.msra.mxu0 0.0
    %1231 = vmatprep.subr.mxu0 0.0
    %1232 = vmatpush1.msra.mxu0 0.0
    %1233 = vmatprep.subr.mxu0 0.0
    %1234 = vmatpush1.msra.mxu0 0.0
    %1235 = vmatprep.subr.mxu0 0.0
    %1236 = vmatpush1.msra.mxu0 0.0
    %1237 = vmatprep.subr.mxu0 0.0
    %1238 = vmatpush1.msra.mxu0 0.0
    %1239 = vmatprep.subr.mxu0 0.0
    %1240 = vmatpush1.msra.mxu0 0.0
    %1241 = vmatprep.subr.mxu0 0.0
    %1242 = vmatpush1.msra.mxu0 0.0
    %1243 = vmatprep.subr.mxu0 0.0
    %1244 = vmatpush1.msra.mxu0 0.0
    %1245 = vmatprep.subr.mxu0 0.0
    %1246 = vmatpush1.msra.mxu0 0.0
    %1247 = vmatprep.subr.mxu0 0.0
    %1248 = vmatpush1.msra.mxu0 0.0
    %1249 = vmatprep.subr.mxu0 0.0
    %1250 = vmatpush1.msra.mxu0 0.0
    %1251 = vmatprep.subr.mxu0 0.0
    %1252 = vmatpush1.msra.mxu0 0.0
    %1253 = vmatprep.subr.mxu0 0.0
    %1254 = vmatpush1.msra.mxu0 0.0
    %1255 = vmatprep.subr.mxu0 0.0
    %1256 = vmatpush1.msra.mxu0 0.0
    %1257 = vmatprep.subr.mxu0 0.0
    %1258 = vmatpush1.msra.mxu0 0.0
    %1259 = vmatprep.subr.mxu0 0.0
    %1260 = vmatpush1.msra.mxu0 0.0
    %1261 = vmatprep.subr.mxu0 0.0
    %1262 = vmatpush1.msra.mxu0 0.0
    %1263 = vmatprep.subr.mxu0 0.0
    %1264 = vmatpush1.msra.mxu0 0.0
    %1265 = vmatprep.subr.mxu0 0.0
    %1266 = vmatpush1.msra.mxu0 0.0
    %1267 = vmatprep.subr.mxu0 0.0
    %1268 = vmatpush1.msra.mxu0 0.0
    %1269 = vmatprep.subr.mxu0 0.0
    %1270 = vmatpush1.msra.mxu0 0.0
    %1271 = vmatprep.subr.mxu0 0.0
    %1272 = vmatpush1.msra.mxu0 0.0
    %1273 = vmatprep.subr.mxu0 0.0
    %1274 = vmatpush1.msra.mxu0 0.0
    %1275 = vmatprep.mubr.f32.mxu0 0.0
    %1276 = vmatmul.mubr.f32.gmra.mrb[0].mxu0 %v333
    %v1277 = vpop.f32.mrb[0].mxu0
    %v1278 = vadd.f32 0.0, %v1277
    %v1279 = vpop.f32.mrb[0].mxu0
    %1280 = vmatprep.mubr.f32.mxu0 0.0
    %1281 = vmatmul.mubr.f32.gmra.mrb[0].mxu0 %v336
    %v1282 = vpop.f32.mrb[0].mxu0
    %v1283 = vadd.f32 0.0, %v1282
    %v1284 = vpop.f32.mrb[0].mxu0
    %1285 = vmatprep.mubr.f32.mxu0 0.0
    %1286 = vmatmul.mubr.f32.gmra.mrb[0].mxu0 %v339
    %v1287 = vpop.f32.mrb[0].mxu0
    %v1288 = vadd.f32 0.0, %v1287
    %v1289 = vpop.f32.mrb[0].mxu0
    %1290 = vmatprep.mubr.f32.mxu0 0.0
    %1291 = vmatmul.mubr.f32.gmra.mrb[0].mxu0 %v342
    %v1292 = vpop.f32.mrb[0].mxu0
    %v1293 = vadd.f32 0.0, %v1292
    %v1294 = vpop.f32.mrb[0].mxu0
    %1295 = vmatprep.mubr.f32.mxu0 0.0
    %1296 = vmatmul.mubr.f32.gmra.mrb[0].mxu0 %v345
    %v1297 = vpop.f32.mrb[0].mxu0
    %v1298 = vadd.f32 0.0, %v1297
    %v1299 = vpop.f32.mrb[0].mxu0
    %1300 = vmatprep.mubr.f32.mxu0 0.0
    %1301 = vmatmul.mubr.f32.gmra.mrb[0].mxu0 %v348
    %v1302 = vpop.f32.mrb[0].mxu0
    %v1303 = vadd.f32 0.0, %v1302
    %v1304 = vpop.f32.mrb[0].mxu0
    %1305 = vmatprep.mubr.f32.mxu0 0.0
    %1306 = vmatmul.mubr.f32.gmra.mrb[0].mxu0 %v351
    %v1307 = vpop.f32.mrb[0].mxu0
    %v1308 = vadd.f32 0.0, %v1307
    %v1309 = vpop.f32.mrb[0].mxu0
    %1310 = vmatprep.mubr.f32.mxu0 0.0
    %1311 = vmatmul.mubr.f32.gmra.mrb[0].mxu0 %v354
    %v1312 = vpop.f32.mrb[0].mxu0
    %v1313 = vadd.f32 0.0, %v1312
    %v1314 = vpop.f32.mrb[0].mxu0
    %1315 = vdwg.mxu0
    %v1316 = vmul.f32 %v1278, 0.9
    %v1317 = vmul.f32 %v1283, 0.9
    %v1318 = vmul.f32 %v1288, 0.9
    %v1319 = vmul.f32 %v1293, 0.9
    %v1320 = vmul.f32 %v1298, 0.9
    %v1321 = vmul.f32 %v1303, 0.9
    %v1322 = vmul.f32 %v1308, 0.9
    %v1323 = vmul.f32 %v1313, 0.9
    %v1324 = vadd.f32 %v1316, %v469
    %v1325 = vadd.f32 %v1317, %v470
    %v1326 = vadd.f32 %v1318, %v471
    %v1327 = vadd.f32 %v1319, %v472
    %v1328 = vadd.f32 %v1320, %v473
    %v1329 = vadd.f32 %v1321, %v474
    %v1330 = vadd.f32 %v1322, %v475
    %v1331 = vadd.f32 %v1323, %v476
    %1332 = vst [vmem:[#allocation5] sm:$0xff] %v1324
    %1333 = vst [vmem:[#allocation5 + $0x8] sm:$0xff] %v1325
    %1334 = vst [vmem:[#allocation5 + $0x10] sm:$0xff] %v1326
    %1335 = vst [vmem:[#allocation5 + $0x18] sm:$0xff] %v1327
    %1336 = vst [vmem:[#allocation5 + $0x20] sm:$0xff] %v1328
    %1337 = vst [vmem:[#allocation5 + $0x28] sm:$0xff] %v1329
    %1338 = vst [vmem:[#allocation5 + $0x30] sm:$0xff] %v1330
    %1339 = vst [vmem:[#allocation5 + $0x38] sm:$0xff] %v1331
    // Predicated region
    $region30: #{tpu_custom_call.1} parent=1 // pred_check
      _
    $region31: #{tpu_custom_call.1} parent=1 // pred_check_branch
      %1341 = sbr.rel (0) target = $region33
    $region32: #{tpu_custom_call.1} parent=1 // pred_region
      %s1343 = ssub.s32 1024, 1024
      %1344 = vsyncadd [#allocation4], %s1343
      %s1345 = sshll.u32 [#allocation5], 4
      %s1346 = int_to_ptr.vmem [resolvable:$true] %s1345
      %1351 = dma.vmem_to_hbm [thread:$0]  %s1346, 1024, %s6, [#allocation4], 128, 128, 8
    $region33: #{tpu_custom_call.1} parent=1 // pred_fallthru
      _
    // Predicated region
    $region34: #{tpu_custom_call.1} parent=1 // pred_check
      _
    $region35: #{tpu_custom_call.1} parent=1 // pred_check_branch
      %1353 = sbr.rel (0) target = $region37
    $region36: #{tpu_custom_call.1} parent=1 // pred_region
      %1354 = dma.done [#allocation4], 1024
    $region37: #{tpu_custom_call.1} parent=1 // pred_fallthru
      _
    %1355 = vsyncpa [#allocation3], 1
    %1356 = vsyncpa [#allocation4], 1

</llo_original>
